<compile_context>
chip_gen: v5e
topology: v5e:2x2
jax: 0.10.0
libtpu: 0.0.40
codegen_flags: <defaults>
</compile_context>

<pallas_src>
import functools
import math

import jax
import jax.numpy as jnp
from jax.experimental import pallas as pl
from jax.experimental.pallas import tpu as pltpu


def _round_up(x: int, m: int) -> int:
    return ((x + m - 1) // m) * m


def _vmem_budget_bytes() -> int:
    """Usable VMEM budget: 0.8 * physical (headroom for compiler scratch)."""
    phys = 64 * 1024 * 1024                     # conservative fallback (v7x)
    try:
        info = pltpu.get_tpu_info()
        phys = int(getattr(info, "vmem_capacity_bytes", phys)) or phys
    except Exception:
        pass
    return int(phys * 0.8)


def _choose_group(num_proj: int, emb_dim: int) -> int:
    """Heads per MXU group.

    g*D must be a multiple of 128 when head-chunking is possible; prefer ~256
    lanes (full v6e/v7x MXU width) but never at the cost of extra head padding
    (the kernel is memory-bound, padded output columns cost HBM bandwidth).
    """
    base = 128 // math.gcd(emb_dim, 128)        # base*D % 128 == 0
    g_ideal = base
    while g_ideal * emb_dim < 256:
        g_ideal += base
    if num_proj <= g_ideal:
        return num_proj                          # single group, zero padding
    best = None
    g = base
    while g <= g_ideal:
        key = (_round_up(num_proj, g), -g)       # min padding, then widest
        if best is None or key < best[0]:
            best = (key, g)
        g += base
    return best[1]


def _choose_groups_per_chunk(total_groups, gd, max_unroll, out_itemsize):
    """Groups per head-chunk: bounded unroll, long writeback segments, min pad."""
    gpc_max = max(1, min(total_groups, max_unroll))
    best = None
    for gpc in range(gpc_max, 0, -1):
        seg_ok = gpc * gd * out_itemsize >= 2048     # >= 2 KiB / row writeback
        key = (0 if seg_ok else 1, _round_up(total_groups, gpc), -gpc)
        if best is None or key < best[0]:
            best = (key, gpc)
    return best[1]


def _estimate_vmem(tn, gpc, g, d, w_isz, out_isz) -> int:
    gd = g * d
    ph = gpc * g
    est = 2 * tn * d * 4                          # x tile (f32), double-buffered
    est += 2 * tn * ph * d * out_isz              # out tile, double-buffered
    est += 2 * gpc * d * gd * w_isz               # W1 chunk
    est += 2 * gpc * gd * gd * w_isz              # block-diag W2 chunk
    est += 2 * 2 * gpc * gd * 4                   # b1 + b2 chunks (f32)
    est += 4 * tn * gd * 4                        # per-group live temporaries
    est += 1 * 1024 * 1024                        # slack
    return est


def _plan_tiles(total_groups, g, d, row_tile, cap, w_isz, out_isz, max_unroll):
    """Jointly pick (groups_per_chunk, row_tile) so the footprint fits `cap`."""
    gd = g * d
    gpc = _choose_groups_per_chunk(total_groups, gd, max_unroll, out_isz)
    tn_max = _round_up(max(int(row_tile), 8), 8)
    while True:
        tn = tn_max
        while True:
            if _estimate_vmem(tn, gpc, g, d, w_isz, out_isz) <= cap:
                return gpc, tn
            if tn <= 8:
                break
            tn = max(8, _round_up(tn // 2, 8))
        if gpc <= 1:
            return 1, 8                            # last resort
        gpc = max(1, gpc // 2)


def pack_stage1_params(w1, b1, w2, b2, *, param_dtype=jnp.bfloat16,
                       row_tile=512, heads_per_chunk=None,
                       vmem_budget_bytes=None, out_dtype=jnp.float32,
                       max_unroll_groups=8):
    """Pack the per-head nn.Linear params ONCE at load time.

    w1, w2: (P, D, D) in torch nn.Linear (out_features, in_features) layout.
    b1, b2: (P, D).
    """
    w1 = jnp.asarray(w1, jnp.float32)
    b1 = jnp.asarray(b1, jnp.float32)
    w2 = jnp.asarray(w2, jnp.float32)
    b2 = jnp.asarray(b2, jnp.float32)
    num_proj, emb_dim, _ = w1.shape

    g = _choose_group(num_proj, emb_dim)
    gd = g * emb_dim
    w_isz = jnp.dtype(param_dtype).itemsize
    out_isz = jnp.dtype(out_dtype).itemsize
    cap = int(vmem_budget_bytes) if vmem_budget_bytes else _vmem_budget_bytes()
    total_groups = _round_up(num_proj, g) // g

    if heads_per_chunk is not None:               # explicit override (tests)
        gpc = max(1, min(total_groups, -(-int(heads_per_chunk) // g)))
        tn = _round_up(max(int(row_tile), 8), 8)
    else:
        gpc, tn = _plan_tiles(total_groups, g, emb_dim, row_tile, cap,
                              w_isz, out_isz, max_unroll_groups)

    padded_groups = _round_up(total_groups, gpc)
    padded_proj = padded_groups * g
    ph = gpc * g

    def pad_heads(a):
        if padded_proj == num_proj:
            return a
        pad = [(0, padded_proj - num_proj)] + [(0, 0)] * (a.ndim - 1)
        return jnp.pad(a, pad)

    w1p, b1p, w2p, b2p = pad_heads(w1), pad_heads(b1), pad_heads(w2), pad_heads(b2)

    # W1^T fused over all heads: x @ w1cat == concat_p(x @ w1[p].T).
    w1cat = jnp.transpose(w1p, (2, 0, 1)).reshape(emb_dim, padded_proj * emb_dim)

    # Block-diagonal W2^T per group of g heads: (total_groups, g*D, g*D).
    w2t = jnp.transpose(w2p, (0, 2, 1)).reshape(padded_groups, g, emb_dim, emb_dim)
    w2blk = jnp.zeros((padded_groups, gd, gd), jnp.float32)
    for j in range(g):
        w2blk = w2blk.at[:, j * emb_dim:(j + 1) * emb_dim,
                         j * emb_dim:(j + 1) * emb_dim].set(w2t[:, j])

    return {
        "w1cat": w1cat.astype(param_dtype),
        "b1cat": b1p.reshape(1, padded_proj * emb_dim).astype(jnp.float32),
        "w2blk": w2blk.astype(param_dtype),
        "b2cat": b2p.reshape(1, padded_proj * emb_dim).astype(jnp.float32),
        "num_proj": int(num_proj),
        "padded_proj": int(padded_proj),
        "heads_per_chunk": int(ph),
        "group_heads": int(g),
        "emb_dim": int(emb_dim),
        "row_tile": int(tn),
        "out_dtype": jnp.dtype(out_dtype),
        "vmem_limit_bytes": int(max(cap, 32 * 1024 * 1024)),
    }


def _stage1_kernel(x_ref, w1_ref, b1_ref, w2_ref, b2_ref, o_ref, *,
                   adapter, n_groups, group_width, compute_dtype):
    # x_ref:  (tn, D)            f32 region vectors (row tile)
    # w1_ref: (D, ph*D)          bf16 fused W1^T for this head chunk
    # b1_ref: (1, ph*D)          f32
    # w2_ref: (gpc, g*D, g*D)    bf16 block-diagonal W2^T per head group
    # b2_ref: (1, ph*D)          f32
    # o_ref:  (tn, ph*D)         output tile in torch.cat(dim=1) layout
    gd = group_width
    x_f32 = x_ref[...]
    x_mx = x_f32.astype(compute_dtype)

    x_res = None
    if adapter:
        x_res = 0.8 * x_f32                        # full-precision residual
        reps = gd // x_f32.shape[-1]
        if reps > 1:                               # tile across the group lanes
            x_res = jnp.concatenate([x_res] * reps, axis=-1)

    # Bounded static unroll over head groups (n_groups <= max_unroll_groups);
    # all slices use static, lane-aligned offsets -> dense vld/vst.
    for gi in range(n_groups):
        lo, hi = gi * gd, (gi + 1) * gd
        h = jnp.dot(x_mx, w1_ref[:, lo:hi], preferred_element_type=jnp.float32)
        h = jnp.maximum(h + b1_ref[:, lo:hi], 0.0)          # bias(f32) + ReLU
        pool = jnp.dot(h.astype(compute_dtype), w2_ref[gi],
                       preferred_element_type=jnp.float32)
        pool = pool + b2_ref[:, lo:hi]
        if adapter:
            pool = 0.2 * pool + x_res
        o_ref[:, lo:hi] = pool.astype(o_ref.dtype)


def stage1_rn50_forward(img, params, *, adapter, out_dtype=None,
                        vmem_limit_bytes=None):
    """Pallas forward of Stage1_RN50: img (N, D) -> region_proj_embs (N, P, D)."""
    img = jnp.asarray(img).astype(jnp.float32)     # .to(torch.float32)
    n_rows, emb_dim = img.shape
    assert emb_dim == params["emb_dim"]
    num_proj = params["num_proj"]
    padded_proj = params["padded_proj"]
    ph = params["heads_per_chunk"]
    g = params["group_heads"]
    gd = g * emb_dim
    n_groups = ph // g
    head_chunks = padded_proj // ph
    out_dtype = jnp.dtype(out_dtype) if out_dtype is not None else params["out_dtype"]

    # Row tiling (multiple of 8 sublanes).
    tn = min(params["row_tile"], _round_up(max(n_rows, 1), 8))
    tn = _round_up(tn, 8)
    # Keep >= 2 grid steps when there is only one head chunk so both v7x
    # TensorCores get work (costs one extra ~0.35us grid step elsewhere).
    if head_chunks == 1 and n_rows > 8 and _round_up(n_rows, tn) // tn < 2:
        tn = max(8, _round_up((n_rows + 1) // 2, 8))
    n_pad = _round_up(n_rows, tn)
    img_p = img if n_pad == n_rows else jnp.pad(img, ((0, n_pad - n_rows), (0, 0)))

    w1cat, b1cat, w2blk, b2cat = (params[k] for k in
                                  ("w1cat", "b1cat", "w2blk", "b2cat"))
    compute_dtype = w1cat.dtype
    if vmem_limit_bytes is None:
        vmem_limit_bytes = params["vmem_limit_bytes"]

    kernel = functools.partial(_stage1_kernel, adapter=bool(adapter),
                               n_groups=n_groups, group_width=gd,
                               compute_dtype=compute_dtype)

    grid = (head_chunks, n_pad // tn)              # heads outer (weights resident)
    flops = 4 * n_pad * padded_proj * emb_dim * emb_dim
    bytes_accessed = (head_chunks * n_pad * emb_dim * 4
                      + n_pad * padded_proj * emb_dim * out_dtype.itemsize
                      + w1cat.size * w1cat.dtype.itemsize
                      + w2blk.size * w2blk.dtype.itemsize
                      + b1cat.size * 4 + b2cat.size * 4)

    out = pl.pallas_call(
        kernel,
        out_shape=jax.ShapeDtypeStruct((n_pad, padded_proj * emb_dim), out_dtype),
        grid_spec=pltpu.PrefetchScalarGridSpec(
            num_scalar_prefetch=0,
            grid=grid,
            in_specs=[
                pl.BlockSpec((tn, emb_dim), lambda pc, n: (n, 0)),             # x
                pl.BlockSpec((emb_dim, ph * emb_dim), lambda pc, n: (0, pc)),  # W1^T
                pl.BlockSpec((1, ph * emb_dim), lambda pc, n: (0, pc)),        # b1
                pl.BlockSpec((n_groups, gd, gd), lambda pc, n: (pc, 0, 0)),    # W2 blkdiag
                pl.BlockSpec((1, ph * emb_dim), lambda pc, n: (0, pc)),        # b2
            ],
            out_specs=pl.BlockSpec((tn, ph * emb_dim), lambda pc, n: (n, pc)),
        ),
        compiler_params=pltpu.CompilerParams(
            dimension_semantics=("parallel", "parallel"),
            vmem_limit_bytes=int(vmem_limit_bytes),
        ),
        cost_estimate=pl.CostEstimate(flops=int(flops), transcendentals=0,
                                      bytes_accessed=int(bytes_accessed)),
    )(img_p, w1cat, b1cat, w2blk, b2cat)

    # (N_pad, P_pad*D) -> (N, P, D)  ==  torch.cat(out_img_a, dim=1).view(-1, P, D)
    region = out[:n_rows, : num_proj * emb_dim].reshape(n_rows, num_proj, emb_dim)
    return {"region_proj_embs": region}


# ----------------------------- references -----------------------------------

def _dot_hi(a, b):
    return jnp.dot(a, b, precision=jax.lax.Precision.HIGHEST)


def _reference_f32(img, w1, b1, w2, b2, adapter):
    """Pure-f32 JAX mirror of the PyTorch forward (module semantics)."""
    img = img.astype(jnp.float32)
    outs = []
    for p in range(w1.shape[0]):
        h = jnp.maximum(_dot_hi(img, w1[p].T) + b1[p], 0.0)
        pool = _dot_hi(h, w2[p].T) + b2[p]
        if adapter:
            pool = 0.2 * pool + 0.8 * img
        outs.append(pool)
    return jnp.concatenate(outs, axis=1).reshape(img.shape[0], w1.shape[0], -1)


def _reference_matched(img, w1, b1, w2, b2, adapter, dtype):
    """Mirrors the kernel's numerics (bf16 matmul inputs, f32 accumulation)."""
    img = img.astype(jnp.float32)
    x = img.astype(dtype).astype(jnp.float32)
    outs = []
    for p in range(w1.shape[0]):
        w1t = w1[p].T.astype(dtype).astype(jnp.float32)
        w2t = w2[p].T.astype(dtype).astype(jnp.float32)
        h = jnp.maximum(_dot_hi(x, w1t) + b1[p], 0.0)
        h = h.astype(dtype).astype(jnp.float32)
        pool = _dot_hi(h, w2t) + b2[p]
        if adapter:
            pool = 0.2 * pool + 0.8 * img
        outs.append(pool)
    return jnp.concatenate(outs, axis=1).reshape(img.shape[0], w1.shape[0], -1)


if __name__ == "__main__":
    # TODO(synk): in the original code num_proj = len(torch.load(attr_embs.pth));
    # here it is a synthetic constant (no file I/O allowed in-script).

    def _make_params(key, num_proj, emb_dim):
        ks = jax.random.split(key, 4)
        scale = 1.0 / math.sqrt(emb_dim)
        mk = lambda k, shp: jax.random.uniform(k, shp, minval=-scale,
                                               maxval=scale, dtype=jnp.float32)
        return (mk(ks[0], (num_proj, emb_dim, emb_dim)),
                mk(ks[1], (num_proj, emb_dim)),
                mk(ks[2], (num_proj, emb_dim, emb_dim)),
                mk(ks[3], (num_proj, emb_dim)))

    def _check(got, img, w1, b1, w2, b2, adapter):
        want_m = _reference_matched(img, w1, b1, w2, b2, adapter, jnp.bfloat16)
        want_f = _reference_f32(img, w1, b1, w2, b2, adapter)
        assert jnp.allclose(got, want_m, atol=2e-3, rtol=2e-3), (
            "mismatch vs matched ref: max abs err "
            f"{float(jnp.max(jnp.abs(got - want_m)))}")
        assert jnp.allclose(got, want_f, atol=5e-2, rtol=5e-2), (
            "mismatch vs f32 ref: max abs err "
            f"{float(jnp.max(jnp.abs(got - want_f)))}")

    key = jax.random.PRNGKey(0)
    k_a, k_b, k_ia, k_ib = jax.random.split(key, 4)

    # Config A: emb_dim=32, 6 heads, 20 regions, adapter=True.
    # -> single group / single head chunk, no head padding, row-tiled grid.
    emb_dim, num_proj, n_regions, adapter = 32, 6, 20, True
    w1, b1, w2, b2 = _make_params(k_a, num_proj, emb_dim)
    img = jax.random.normal(k_ia, (n_regions, emb_dim), dtype=jnp.float32)
    params = pack_stage1_params(w1, b1, w2, b2)
    fwd = jax.jit(lambda x: stage1_rn50_forward(x, params, adapter=adapter))
    got = jax.block_until_ready(fwd(img)["region_proj_embs"])
    assert got.shape == (n_regions, num_proj, emb_dim), got.shape
    _check(got, img, w1, b1, w2, b2, adapter)

    # Config B: 20 heads, 64 regions, adapter=False; heads_per_chunk=8 forces
    # the chunked path (heads padded 20->24, 3 head chunks x 2 groups) plus
    # row tiling (tn=16 -> 4 row tiles).
    emb_dim, num_proj, n_regions, adapter = 32, 20, 64, False
    w1, b1, w2, b2 = _make_params(k_b, num_proj, emb_dim)
    img = jax.random.normal(k_ib, (n_regions, emb_dim), dtype=jnp.float32)
    params_b = pack_stage1_params(w1, b1, w2, b2, row_tile=16, heads_per_chunk=8)
    fwd_b = jax.jit(lambda x: stage1_rn50_forward(x, params_b, adapter=adapter))
    got_b = jax.block_until_ready(fwd_b(img)["region_proj_embs"])
    assert got_b.shape == (n_regions, num_proj, emb_dim), got_b.shape
    _check(got_b, img, w1, b1, w2, b2, adapter)

    print("KERNEL_OK")
</pallas_src>

<mosaic_0001>
module attributes {stable_mosaic.version = 11 : i64} {
  func.func @_stage1_kernel(%arg0: i32, %arg1: i32, %arg2: memref<16x32xf32, #tpu.memory_space<vmem>>, %arg3: memref<32x192xbf16, #tpu.memory_space<vmem>>, %arg4: memref<1x192xf32, #tpu.memory_space<vmem>>, %arg5: memref<1x192x192xbf16, #tpu.memory_space<vmem>>, %arg6: memref<1x192xf32, #tpu.memory_space<vmem>>, %arg7: memref<16x192xf32, #tpu.memory_space<vmem>>) attributes {dimension_semantics = [#tpu.dimension_semantics<parallel>, #tpu.dimension_semantics<parallel>], iteration_bounds = array<i64: 1, 2>, scalar_prefetch = 0 : i64, scratch_operands = 0 : i64, tpu.core_type = #tpu.core_type<tc>, window_params = [{transform_indices = @transform_0, window_bounds = array<i64: 16, 32>}, {transform_indices = @transform_1, window_bounds = array<i64: 32, 192>}, {transform_indices = @transform_2, window_bounds = array<i64: 1, 192>}, {transform_indices = @transform_3, window_bounds = array<i64: 1, 192, 192>}, {transform_indices = @transform_4, window_bounds = array<i64: 1, 192>}, {transform_indices = @transform_5, window_bounds = array<i64: 16, 192>}]} {
    %c0 = arith.constant 0 : index
    %c0_0 = arith.constant 0 : index
    %0 = vector.load %arg2[%c0, %c0_0] : memref<16x32xf32, #tpu.memory_space<vmem>>, vector<16x32xf32>
    %1 = arith.truncf %0 : vector<16x32xf32> to vector<16x32xbf16>
    %cst = arith.constant 8.000000e-01 : f32
    %2 = vector.broadcast %cst : f32 to vector<16x32xf32>
    %3 = arith.mulf %2, %0 : vector<16x32xf32>
    %4 = tpu.concatenate %3, %3, %3, %3, %3, %3 in 1 : vector<16x32xf32>, vector<16x32xf32>, vector<16x32xf32>, vector<16x32xf32>, vector<16x32xf32>, vector<16x32xf32> -> vector<16x192xf32>
    %c0_1 = arith.constant 0 : index
    %c0_2 = arith.constant 0 : index
    %5 = vector.load %arg3[%c0_1, %c0_2] : memref<32x192xbf16, #tpu.memory_space<vmem>>, vector<32x192xbf16>
    %cst_3 = arith.constant dense<0.000000e+00> : vector<16x192xf32>
    %6 = tpu.matmul %1, %5, %cst_3 {dimension_numbers = #tpu.dot_dimension_numbers<[1], [0], [0], [1], [0, 0, 1, 1], [], []>} : vector<16x32xbf16>, vector<32x192xbf16>, vector<16x192xf32> -> vector<16x192xf32>
    %c0_4 = arith.constant 0 : index
    %c0_5 = arith.constant 0 : index
    %7 = vector.load %arg4[%c0_4, %c0_5] : memref<1x192xf32, #tpu.memory_space<vmem>>, vector<1x192xf32>
    %8 = vector.broadcast %7 : vector<1x192xf32> to vector<16x192xf32>
    %9 = arith.addf %6, %8 : vector<16x192xf32>
    %cst_6 = arith.constant 0.000000e+00 : f32
    %10 = vector.broadcast %cst_6 : f32 to vector<16x192xf32>
    %11 = arith.maximumf %9, %10 : vector<16x192xf32>
    %12 = arith.truncf %11 : vector<16x192xf32> to vector<16x192xbf16>
    %c0_7 = arith.constant 0 : index
    %c0_8 = arith.constant 0 : index
    %c0_9 = arith.constant 0 : index
    %13 = vector.load %arg5[%c0_7, %c0_8, %c0_9] : memref<1x192x192xbf16, #tpu.memory_space<vmem>>, vector<1x192x192xbf16>
    %14 = vector.shape_cast %13 : vector<1x192x192xbf16> to vector<192x192xbf16>
    %cst_10 = arith.constant dense<0.000000e+00> : vector<16x192xf32>
    %15 = tpu.matmul %12, %14, %cst_10 {dimension_numbers = #tpu.dot_dimension_numbers<[1], [0], [0], [1], [0, 0, 1, 1], [], []>} : vector<16x192xbf16>, vector<192x192xbf16>, vector<16x192xf32> -> vector<16x192xf32>
    %c0_11 = arith.constant 0 : index
    %c0_12 = arith.constant 0 : index
    %16 = vector.load %arg6[%c0_11, %c0_12] : memref<1x192xf32, #tpu.memory_space<vmem>>, vector<1x192xf32>
    %17 = vector.broadcast %16 : vector<1x192xf32> to vector<16x192xf32>
    %18 = arith.addf %15, %17 : vector<16x192xf32>
    %cst_13 = arith.constant 2.000000e-01 : f32
    %19 = vector.broadcast %cst_13 : f32 to vector<16x192xf32>
    %20 = arith.mulf %19, %18 : vector<16x192xf32>
    %21 = arith.addf %20, %4 : vector<16x192xf32>
    %c0_14 = arith.constant 0 : index
    %c0_15 = arith.constant 0 : index
    %22 = vector.load %arg7[%c0_14, %c0_15] : memref<16x192xf32, #tpu.memory_space<vmem>>, vector<16x192xf32>
    tpu.vector_store %arg7[%c0_14, %c0_15], %21 {strides = array<i32>} : memref<16x192xf32, #tpu.memory_space<vmem>>, vector<16x192xf32>,
    return
  }
  func.func @transform_0(%arg0: i32, %arg1: i32) -> (i32, i32) {
    %c0_i32 = arith.constant 0 : i32
    %c0_i32_0 = arith.constant 0 : i32
    return %arg1, %c0_i32 : i32, i32
  }
  func.func @transform_1(%arg0: i32, %arg1: i32) -> (i32, i32) {
    %c0_i32 = arith.constant 0 : i32
    %c0_i32_0 = arith.constant 0 : i32
    return %c0_i32, %arg0 : i32, i32
  }
  func.func @transform_2(%arg0: i32, %arg1: i32) -> (i32, i32) {
    %c0_i32 = arith.constant 0 : i32
    %c0_i32_0 = arith.constant 0 : i32
    return %c0_i32, %arg0 : i32, i32
  }
  func.func @transform_3(%arg0: i32, %arg1: i32) -> (i32, i32, i32) {
    %c0_i32 = arith.constant 0 : i32
    %c0_i32_0 = arith.constant 0 : i32
    %c0_i32_1 = arith.constant 0 : i32
    return %arg0, %c0_i32, %c0_i32_0 : i32, i32, i32
  }
  func.func @transform_4(%arg0: i32, %arg1: i32) -> (i32, i32) {
    %c0_i32 = arith.constant 0 : i32
    %c0_i32_0 = arith.constant 0 : i32
    return %c0_i32, %arg0 : i32, i32
  }
  func.func @transform_5(%arg0: i32, %arg1: i32) -> (i32, i32) {
    %c0_i32 = arith.constant 0 : i32
    return %arg1, %arg0 : i32, i32
  }
}

</mosaic_0001>

<llo_original>
// kernel: _lambda_.1
$region0: #{_lambda_.1}
  #allocation0 [shape = 'u32[]', space=smem, size = 0x4, offset = 0x4, fixed_abs, tag = 'smem constant byte address 0x4 - core index']
  #allocation1 [shape = 'u32[72,128]{1,0:T(1,128)}', space=vmem, size = 0x9000, scoped, tag = 'internal scratch']
  %s0 = inlined_call_operand.vmem [shape: f32[32,32], index: 0, kind: input, shape index: {}]
  %s1 = inlined_call_operand.vmem [shape: bf16[32,192], index: 1, kind: input, shape index: {}]
  %s2 = inlined_call_operand.vmem [shape: f32[1,192], index: 2, kind: input, shape index: {}]
  %s3 = inlined_call_operand.hbm [shape: bf16[1,192,192], index: 3, kind: input, shape index: {}]
  %s4 = inlined_call_operand.vmem [shape: f32[1,192], index: 4, kind: input, shape index: {}]
  %s5 = inlined_call_operand.vmem [shape: f32[32,192], index: 5, kind: output, shape index: {}]
  %s6 = sld [smem:[#allocation0]]
  $region57: #{_lambda_.1} parent=0
    _
  %s8 = ssub.s32 1, %s6
  %s9 = scalar_select 0, %s8, %s6
  $region1: #{_lambda_.1} parent=0
    #allocation2 [shape = 'u8[98304]{0}', space=vmem, size = 0x18000, scoped, tag = 'input window, operand 3, single buffered']
    #allocation3 [shape = 's32[2]{0}', space=sflag, size = 0x8, scoped, tag = 'scoped memory for _lambda_.1']
    %10 = vsyncpa [#allocation3], 0
    loop: start=0, step=1, limit=4
    $region2: #{_lambda_.1} parent=1 // loop_pre_header
      _
    $region3: #{_lambda_.1} parent=1 // loop_header
      %s12 = sphi 0, %s16
      %p13 = scmp.ge.s32.totalorder %s12, 4
      %s19 = sphi 0, %s31
      %s20 = sphi 0, %s27
      %s21 = sphi 0, %s19
      %s22 = sphi 0, %s20
      %s23 = sphi 0, %s21
      %s24 = sphi 0, %s22
      %s34 = sphi 0, %s36
      %s37 = sphi 0, %s34
      %s38 = sphi 0, %s37
      %s54 = sphi 0, %s38
      %s60 = sphi 0, %s62
      %s63 = sphi 0, %s60
      %s64 = sphi 0, %s63
      %s80 = sphi 0, %s64
      %s86 = sphi 0, %s88
      %s89 = sphi 0, %s86
      %s90 = sphi 0, %s89
      %s106 = sphi 0, %s90
      %s112 = sphi 0, %s114
      %s115 = sphi 0, %s112
      %s116 = sphi 0, %s115
      %s132 = sphi 0, %s116
      %s138 = sphi 0, %s140
      %s141 = sphi 0, %s138
      %s142 = sphi 0, %s141
      %s158 = sphi 0, %s142
      %s166 = sphi 0, %s168
      %s169 = sphi 0, %s166
      %s170 = sphi 0, %s169
      %s186 = sphi 0, %s170
    $region4: #{_lambda_.1} parent=1 // loop_header_branch
      %15 = sbr.rel (%p13) target = $region8
    $region5: #{_lambda_.1} parent=1 // loop_body
      %s17 = ssub.s32 %s12, 1
      %s18 = ssub.s32 %s12, 2
      %s25 = sadd.s32 1, %s20
      %p26 = scmp.ge.s32.totalorder %s25, 2
      %s27 = scalar_select %p26, 0, %s25
      %s28 = sadd.s32 1, %s19
      %s29 = scalar_select %p26, %s28, %s19
      %p30 = scmp.ge.s32.totalorder %s29, 1
      %s31 = scalar_select %p30, 0, %s29
      %s32 = ssub.s32 %s20, %s27
      %p33 = scmp.eq.s32.totalorder %s32, 0
      %s35 = sadd.s32 %s34, 1
      %s36 = scalar_select %p33, %s34, %s35
      %p39 = pneg %p33
      %p40 = scmp.eq.s32.totalorder %s12, 1
      %p41 = por %p39, %p40
      %p42 = scmp.ne.s32.totalorder %s34, %s37
      %p43 = scmp.eq.s32.totalorder %s12, 0
      %p44 = por %p42, %p43
      %p45 = scmp.ne.s32.totalorder %s34, %s37
      %p46 = scmp.eq.s32.totalorder %s17, 1
      %p47 = por %p45, %p46
      %p48 = scmp.ne.s32.totalorder %s37, %s38
      %p49 = scmp.eq.s32.totalorder %s17, 0
      %p50 = por %p48, %p49
      %p51 = scmp.ne.s32.totalorder %s37, %s38
      %p52 = scmp.eq.s32.totalorder %s18, 1
      %p53 = por %p51, %p52
      %p55 = scmp.ne.s32.totalorder %s38, %s54
      %p56 = scmp.eq.s32.totalorder %s18, 0
      %p57 = por %p55, %p56
      %s58 = ssub.s32 %s19, %s31
      %p59 = scmp.eq.s32.totalorder %s58, 0
      %s61 = sadd.s32 %s60, 1
      %s62 = scalar_select %p59, %s60, %s61
      %p65 = pneg %p59
      %p66 = scmp.eq.s32.totalorder %s12, 1
      %p67 = por %p65, %p66
      %p68 = scmp.ne.s32.totalorder %s60, %s63
      %p69 = scmp.eq.s32.totalorder %s12, 0
      %p70 = por %p68, %p69
      %p71 = scmp.ne.s32.totalorder %s60, %s63
      %p72 = scmp.eq.s32.totalorder %s17, 1
      %p73 = por %p71, %p72
      %p74 = scmp.ne.s32.totalorder %s63, %s64
      %p75 = scmp.eq.s32.totalorder %s17, 0
      %p76 = por %p74, %p75
      %p77 = scmp.ne.s32.totalorder %s63, %s64
      %p78 = scmp.eq.s32.totalorder %s18, 1
      %p79 = por %p77, %p78
      %p81 = scmp.ne.s32.totalorder %s64, %s80
      %p82 = scmp.eq.s32.totalorder %s18, 0
      %p83 = por %p81, %p82
      %s84 = ssub.s32 %s19, %s31
      %p85 = scmp.eq.s32.totalorder %s84, 0
      %s87 = sadd.s32 %s86, 1
      %s88 = scalar_select %p85, %s86, %s87
      %p91 = pneg %p85
      %p92 = scmp.eq.s32.totalorder %s12, 1
      %p93 = por %p91, %p92
      %p94 = scmp.ne.s32.totalorder %s86, %s89
      %p95 = scmp.eq.s32.totalorder %s12, 0
      %p96 = por %p94, %p95
      %p97 = scmp.ne.s32.totalorder %s86, %s89
      %p98 = scmp.eq.s32.totalorder %s17, 1
      %p99 = por %p97, %p98
      %p100 = scmp.ne.s32.totalorder %s89, %s90
      %p101 = scmp.eq.s32.totalorder %s17, 0
      %p102 = por %p100, %p101
      %p103 = scmp.ne.s32.totalorder %s89, %s90
      %p104 = scmp.eq.s32.totalorder %s18, 1
      %p105 = por %p103, %p104
      %p107 = scmp.ne.s32.totalorder %s90, %s106
      %p108 = scmp.eq.s32.totalorder %s18, 0
      %p109 = por %p107, %p108
      %s110 = ssub.s32 %s19, %s31
      %p111 = scmp.eq.s32.totalorder %s110, 0
      %s113 = sadd.s32 %s112, 1
      %s114 = scalar_select %p111, %s112, %s113
      %p117 = pneg %p111
      %p118 = scmp.eq.s32.totalorder %s12, 1
      %p119 = por %p117, %p118
      %p120 = scmp.ne.s32.totalorder %s112, %s115
      %p121 = scmp.eq.s32.totalorder %s12, 0
      %p122 = por %p120, %p121
      %p123 = scmp.ne.s32.totalorder %s112, %s115
      %p124 = scmp.eq.s32.totalorder %s17, 1
      %p125 = por %p123, %p124
      %p126 = scmp.ne.s32.totalorder %s115, %s116
      %p127 = scmp.eq.s32.totalorder %s17, 0
      %p128 = por %p126, %p127
      %p129 = scmp.ne.s32.totalorder %s115, %s116
      %p130 = scmp.eq.s32.totalorder %s18, 1
      %p131 = por %p129, %p130
      %p133 = scmp.ne.s32.totalorder %s116, %s132
      %p134 = scmp.eq.s32.totalorder %s18, 0
      %p135 = por %p133, %p134
      %s136 = ssub.s32 %s19, %s31
      %p137 = scmp.eq.s32.totalorder %s136, 0
      %s139 = sadd.s32 %s138, 1
      %s140 = scalar_select %p137, %s138, %s139
      %p143 = pneg %p137
      %p144 = scmp.eq.s32.totalorder %s12, 1
      %p145 = por %p143, %p144
      %p146 = scmp.ne.s32.totalorder %s138, %s141
      %p147 = scmp.eq.s32.totalorder %s12, 0
      %p148 = por %p146, %p147
      %p149 = scmp.ne.s32.totalorder %s138, %s141
      %p150 = scmp.eq.s32.totalorder %s17, 1
      %p151 = por %p149, %p150
      %p152 = scmp.ne.s32.totalorder %s141, %s142
      %p153 = scmp.eq.s32.totalorder %s17, 0
      %p154 = por %p152, %p153
      %p155 = scmp.ne.s32.totalorder %s141, %s142
      %p156 = scmp.eq.s32.totalorder %s18, 1
      %p157 = por %p155, %p156
      %p159 = scmp.ne.s32.totalorder %s142, %s158
      %p160 = scmp.eq.s32.totalorder %s18, 0
      %p161 = por %p159, %p160
      %s162 = ssub.s32 %s20, %s27
      %s163 = ssub.s32 %s19, %s31
      %s164 = sor.u32 %s162, %s163
      %p165 = scmp.eq.s32.totalorder %s164, 0
      %s167 = sadd.s32 %s166, 1
      %s168 = scalar_select %p165, %s166, %s167
      %p171 = pneg %p165
      %p172 = scmp.eq.s32.totalorder %s12, 1
      %p173 = por %p171, %p172
      %p174 = scmp.ne.s32.totalorder %s166, %s169
      %p175 = scmp.eq.s32.totalorder %s12, 0
      %p176 = por %p174, %p175
      %p177 = scmp.ne.s32.totalorder %s166, %s169
      %p178 = scmp.eq.s32.totalorder %s17, 1
      %p179 = por %p177, %p178
      %p180 = scmp.ne.s32.totalorder %s169, %s170
      %p181 = scmp.eq.s32.totalorder %s17, 0
      %p182 = por %p180, %p181
      %p183 = scmp.ne.s32.totalorder %s169, %s170
      %p184 = scmp.eq.s32.totalorder %s18, 1
      %p185 = por %p183, %p184
      %p187 = scmp.ne.s32.totalorder %s170, %s186
      %p188 = scmp.eq.s32.totalorder %s18, 0
      %p189 = por %p187, %p188
      %p190 = scmp.le.s32.totalorder 1, %s12
      %p191 = scmp.lt.s32.totalorder %s12, 3
      %p192 = pnand %p190, %p191
      %p193 = pneg %p192
      // Predicated region
      $region9: #{_lambda_.1} parent=5 // pred_check
        _
      $region10: #{_lambda_.1} parent=5 // pred_check_branch
        %195 = sbr.rel (%p192) target = $region12
      $region11: #{_lambda_.1} parent=5 // pred_region
        %s196 = ssub.s32 %s12, 1
        // Predicated region
        $region13: #{_lambda_.1} parent=11 // pred_check
          %p197 = pneg %p76
        $region14: #{_lambda_.1} parent=11 // pred_check_branch
          %199 = sbr.rel (%p197) target = $region16
        $region15: #{_lambda_.1} parent=11 // pred_region
          %s200 = smul.u32 2, %s21
          %p201 = scmp.lt.s32.totalorder %s200, 1
          %s202 = scalar_select %p201, %s200, 1
          %s203 = smul.addr %s202, 4
          %s204 = scalar_lea.vmem %s1, %s203
          %s205 = smul.u32 2, %s21
        $region16: #{_lambda_.1} parent=11 // pred_fallthru
          _
        // Predicated region
        $region17: #{_lambda_.1} parent=11 // pred_check
          %p206 = pneg %p102
        $region18: #{_lambda_.1} parent=11 // pred_check_branch
          %208 = sbr.rel (%p206) target = $region20
        $region19: #{_lambda_.1} parent=11 // pred_region
          %s209 = smul.u32 2, %s21
          %p210 = scmp.lt.s32.totalorder %s209, 1
          %s211 = scalar_select %p210, %s209, 1
          %s212 = scalar_lea.vmem %s2, %s211
          %s213 = smul.u32 2, %s21
        $region20: #{_lambda_.1} parent=11 // pred_fallthru
          _
        // Predicated region
        $region21: #{_lambda_.1} parent=11 // pred_check
          %p214 = pneg %p128
        $region22: #{_lambda_.1} parent=11 // pred_check_branch
          %216 = sbr.rel (%p214) target = $region24
        $region23: #{_lambda_.1} parent=11 // pred_region
          %218 = vsyncadd [#allocation3], 0
          %s219 = smul.addr %s21, 48
          %s220 = smul.addr %s219, 4
          %s221 = scalar_lea.hbm %s3, %s220
          %s222 = sshll.u32 %s221, 4
          %s223 = int_to_ptr.hbm [resolvable:$true] %s222
          %s224 = sshll.u32 [#allocation2], 4
          %s225 = int_to_ptr.vmem [resolvable:$true] %s224
          %230 = dma.hbm_to_vmem [thread:$0]  %s223, 3072, %s225, [#allocation3], 128, 128, 8
        $region24: #{_lambda_.1} parent=11 // pred_fallthru
          _
        // Predicated region
        $region25: #{_lambda_.1} parent=11 // pred_check
          %p231 = pneg %p154
        $region26: #{_lambda_.1} parent=11 // pred_check_branch
          %233 = sbr.rel (%p231) target = $region28
        $region27: #{_lambda_.1} parent=11 // pred_region
          %s234 = smul.u32 2, %s21
          %p235 = scmp.lt.s32.totalorder %s234, 1
          %s236 = scalar_select %p235, %s234, 1
          %s237 = scalar_lea.vmem %s4, %s236
          %s238 = smul.u32 2, %s21
        $region28: #{_lambda_.1} parent=11 // pred_fallthru
          _
      $region12: #{_lambda_.1} parent=5 // pred_fallthru
        _
      %p239 = scmp.lt.s32.totalorder %s12, 2
      // Predicated region
      $region29: #{_lambda_.1} parent=5 // pred_check
        %p240 = pneg %p239
      $region30: #{_lambda_.1} parent=5 // pred_check_branch
        %242 = sbr.rel (%p240) target = $region32
      $region31: #{_lambda_.1} parent=5 // pred_region
        // Predicated region
        $region33: #{_lambda_.1} parent=31 // pred_check
          %p243 = pneg %p44
        $region34: #{_lambda_.1} parent=31 // pred_check_branch
          %245 = sbr.rel (%p243) target = $region36
        $region35: #{_lambda_.1} parent=31 // pred_region
          %s246 = smul.u32 2, %s20
          %p247 = scmp.lt.s32.totalorder %s246, 3
          %s248 = scalar_select %p247, %s246, 3
          %s249 = smul.addr %s248, 8
          %s250 = scalar_lea.vmem %s0, %s249
          %s251 = smul.u32 2, %s20
        $region36: #{_lambda_.1} parent=31 // pred_fallthru
          _
      $region32: #{_lambda_.1} parent=5 // pred_fallthru
        _
      %p252 = scmp.le.s32.totalorder 1, %s12
      %p253 = scmp.lt.s32.totalorder %s12, 3
      %p254 = pnand %p252, %p253
      %p255 = pneg %p254
      // Predicated region
      $region37: #{_lambda_.1} parent=5 // pred_check
        _
      $region38: #{_lambda_.1} parent=5 // pred_check_branch
        %257 = sbr.rel (%p254) target = $region40
      $region39: #{_lambda_.1} parent=5 // pred_region
        %s258 = ssub.s32 %s12, 1
        // Predicated region
        $region41: #{_lambda_.1} parent=39 // pred_check
          %p259 = pneg %p128
        $region42: #{_lambda_.1} parent=39 // pred_check_branch
          %261 = sbr.rel (%p259) target = $region44
        $region43: #{_lambda_.1} parent=39 // pred_region
          %263 = dma.done [#allocation3], 3072
        $region44: #{_lambda_.1} parent=39 // pred_fallthru
          _
        %s264 = smul.u32 2, %s22
        %p265 = scmp.lt.s32.totalorder %s264, 3
        %s266 = scalar_select %p265, %s264, 3
        %s267 = smul.addr %s266, 8
        %s268 = scalar_lea.vmem %s0, %s267
        %p269 = pneg %p50
        %p270 = pneg %p47
        %s271 = smul.u32 2, %s21
        %p272 = scmp.lt.s32.totalorder %s271, 1
        %s273 = scalar_select %p272, %s271, 1
        %s274 = smul.addr %s273, 4
        %s275 = scalar_lea.vmem %s1, %s274
        %p276 = pneg %p76
        %p277 = pneg %p73
        %s278 = smul.u32 2, %s21
        %p279 = scmp.lt.s32.totalorder %s278, 1
        %s280 = scalar_select %p279, %s278, 1
        %s281 = scalar_lea.vmem %s2, %s280
        %p282 = pneg %p102
        %p283 = pneg %p99
        %p284 = pneg %p128
        %p285 = pneg %p125
        %s286 = smul.u32 2, %s21
        %p287 = scmp.lt.s32.totalorder %s286, 1
        %s288 = scalar_select %p287, %s286, 1
        %s289 = scalar_lea.vmem %s4, %s288
        %p290 = pneg %p154
        %p291 = pneg %p151
        %p292 = pneg %p182
        %p293 = pneg %p179
        %s294 = smul.u32 2, %s22
        %s295 = smul.u32 2, %s21
        %p296 = scmp.lt.s32.totalorder %s294, 3
        %s297 = scalar_select %p296, %s294, 3
        %p298 = scmp.lt.s32.totalorder %s295, 1
        %s299 = scalar_select %p298, %s295, 1
        %s300 = smul.addr %s297, 2
        %s301 = sadd.s32 %s299, %s300
        %s302 = smul.addr %s301, 8
        %s303 = scalar_lea.vmem %s5, %s302
        %s304 = smul.u32 2, %s22
        %p305 = scmp.lt.s32.totalorder %s304, 3
        %s306 = scalar_select %p305, %s304, 3
        %s307 = smul.addr %s306, 8
        %s308 = scalar_lea.vmem %s0, %s307
        %s309 = smul.u32 2, %s22
        %s310 = smul.u32 2, %s21
        %p311 = scmp.lt.s32.totalorder %s310, 1
        %s312 = scalar_select %p311, %s310, 1
        %s313 = smul.addr %s312, 4
        %s314 = scalar_lea.vmem %s1, %s313
        %s315 = smul.u32 2, %s21
        %s316 = smul.u32 2, %s21
        %p317 = scmp.lt.s32.totalorder %s316, 1
        %s318 = scalar_select %p317, %s316, 1
        %s319 = scalar_lea.vmem %s2, %s318
        %s320 = smul.u32 2, %s21
        %s321 = smul.u32 2, %s21
        %p322 = scmp.lt.s32.totalorder %s321, 1
        %s323 = scalar_select %p322, %s321, 1
        %s324 = scalar_lea.vmem %s4, %s323
        %s325 = smul.u32 2, %s21
        %s326 = smul.u32 2, %s22
        %s327 = smul.u32 2, %s21
        %p328 = scmp.lt.s32.totalorder %s326, 3
        %s329 = scalar_select %p328, %s326, 3
        %p330 = scmp.lt.s32.totalorder %s327, 1
        %s331 = scalar_select %p330, %s327, 1
        %s332 = smul.addr %s329, 2
        %s333 = sadd.s32 %s331, %s332
        %s334 = smul.addr %s333, 8
        %s335 = scalar_lea.vmem %s5, %s334
        %s336 = smul.u32 2, %s22
        %s337 = smul.u32 2, %s21
        %v339 = vld [vmem:[%s308] sm:$0xff]
        %v340 = vld [vmem:[%s308 + $0x8] sm:$0xff]
        %v341 = vpack.c.bf16 %v340, %v339
        %v342 = vmul.f32 %v339, 0.8
        %v343 = vmul.f32 %v340, 0.8
        %346 = vrot.lane.b32.xlu0 %v342, 32
        %v347 = vpop.permute.xlu0 %346
        %348 = vrot.lane.b32.xlu0 %v343, 32
        %v349 = vpop.permute.xlu0 %348
        %352 = vrot.lane.b32.xlu0 %v342, 64
        %v353 = vpop.permute.xlu0 %352
        %354 = vrot.lane.b32.xlu0 %v343, 64
        %v355 = vpop.permute.xlu0 %354
        %358 = vrot.lane.b32.xlu0 %v342, 96
        %v359 = vpop.permute.xlu0 %358
        %360 = vrot.lane.b32.xlu0 %v343, 96
        %v361 = vpop.permute.xlu0 %360
        %vm364 = vcmask 261120
        %v365 = vsel %vm364, %v342, %v347
        %v366 = vsel %vm364, %v343, %v349
        %vm367 = vcmask 523264
        %v368 = vsel %vm367, %v365, %v353
        %v369 = vsel %vm367, %v366, %v355
        %vm370 = vcmask 785408
        %v371 = vsel %vm370, %v368, %v359
        %v372 = vsel %vm370, %v369, %v361
        %v373 = vld [vmem:[%s314] sm:$0xff]
        %v374 = vld [vmem:[%s314 + $0x8] sm:$0xff]
        %v375 = vld [vmem:[%s314 + $0x10] sm:$0xff]
        %v376 = vld [vmem:[%s314 + $0x18] sm:$0xff]
        %v377 = vld [vmem:[%s319] sm:$0x3]
        %v379 = vperm.slane %v377, 0
        %v380 = vperm.slane %v377, 1
        %v387 = vunpack.c.l.b16 %v373
        %v388 = vunpack.c.h.b16 %v373
        %v389 = vunpack.c.l.b16 %v374
        %v390 = vunpack.c.h.b16 %v374
        %v391 = vunpack.c.l.b16 %v375
        %v392 = vunpack.c.h.b16 %v375
        %v393 = vunpack.c.l.b16 %v376
        %v394 = vunpack.c.h.b16 %v376
        %v395 = vpack.c.b16 %v389, %v387
        %v396 = vpack.c.b16 %v390, %v388
        %v397 = vpack.c.b16 %v393, %v391
        %v398 = vpack.c.b16 %v394, %v392
        %v404 = vsel %vm364, %v341, 0
        %406 = vmatpush.bf16.msra.mxu0 0
        %407 = vmatpush.bf16.msra.mxu0 0
        %408 = vmatpush.bf16.msra.mxu0 0
        %409 = vmatpush.bf16.msra.mxu0 0
        %410 = vmatpush.bf16.msra.mxu0 0
        %411 = vmatpush.bf16.msra.mxu0 0
        %412 = vmatpush.bf16.msra.mxu0 %v397
        %413 = vmatpush.bf16.msra.mxu0 %v395
        %414 = vmatmul.bf16.gmra.mxu0 %v404
        %v415 = vpop.f32.mrf.mxu0
        %v416 = vadd.f32 %v379, %v415
        %v417 = vpop.f32.mrf.mxu0
        %v418 = vadd.f32 %v379, %v417
        %419 = vdwg.mxu0
        %420 = vmatpush.bf16.msra.mxu0 0
        %421 = vmatpush.bf16.msra.mxu0 0
        %422 = vmatpush.bf16.msra.mxu0 0
        %423 = vmatpush.bf16.msra.mxu0 0
        %424 = vmatpush.bf16.msra.mxu0 0
        %425 = vmatpush.bf16.msra.mxu0 0
        %426 = vmatpush.bf16.msra.mxu0 %v398
        %427 = vmatpush.bf16.msra.mxu0 %v396
        %428 = vmatmul.bf16.gmra.mxu0 %v404
        %v429 = vpop.f32.mrf.mxu0
        %v430 = vadd.f32 %v380, %v429
        %v431 = vpop.f32.mrf.mxu0
        %v432 = vadd.f32 %v380, %v431
        %433 = vdwg.mxu0
        %v434 = vmax.f32 %v416, 0.0
        %v435 = vmax.f32 %v430, 0.0
        %v436 = vmax.f32 %v418, 0.0
        %v437 = vmax.f32 %v432, 0.0
        %v438 = vpack.c.bf16 %v436, %v434
        %v439 = vpack.c.bf16 %v437, %v435
        %v440 = vld [vmem:[#allocation2] sm:$0xff]
        %v441 = vld [vmem:[#allocation2 + $0x8] sm:$0xff]
        %v442 = vld [vmem:[#allocation2 + $0x10] sm:$0xff]
        %v443 = vld [vmem:[#allocation2 + $0x18] sm:$0xff]
        %v444 = vld [vmem:[#allocation2 + $0x20] sm:$0xff]
        %v445 = vld [vmem:[#allocation2 + $0x28] sm:$0xff]
        %v446 = vld [vmem:[#allocation2 + $0x30] sm:$0xff]
        %v447 = vld [vmem:[#allocation2 + $0x38] sm:$0xff]
        %v448 = vld [vmem:[#allocation2 + $0x40] sm:$0xff]
        %v449 = vld [vmem:[#allocation2 + $0x48] sm:$0xff]
        %v450 = vld [vmem:[#allocation2 + $0x50] sm:$0xff]
        %v451 = vld [vmem:[#allocation2 + $0x58] sm:$0xff]
        %v452 = vld [vmem:[#allocation2 + $0x60] sm:$0xff]
        %v453 = vld [vmem:[#allocation2 + $0x68] sm:$0xff]
        %v454 = vld [vmem:[#allocation2 + $0x70] sm:$0xff]
        %v455 = vld [vmem:[#allocation2 + $0x78] sm:$0xff]
        %v456 = vld [vmem:[#allocation2 + $0x80] sm:$0xff]
        %v457 = vld [vmem:[#allocation2 + $0x88] sm:$0xff]
        %v458 = vld [vmem:[#allocation2 + $0x90] sm:$0xff]
        %v459 = vld [vmem:[#allocation2 + $0x98] sm:$0xff]
        %v460 = vld [vmem:[#allocation2 + $0xa0] sm:$0xff]
        %v461 = vld [vmem:[#allocation2 + $0xa8] sm:$0xff]
        %v462 = vld [vmem:[#allocation2 + $0xb0] sm:$0xff]
        %v463 = vld [vmem:[#allocation2 + $0xb8] sm:$0xff]
        %v464 = vld [vmem:[%s324] sm:$0x3]
        %v466 = vperm.slane %v464, 0
        %v467 = vperm.slane %v464, 1
        %v494 = vunpack.c.l.b16 %v440
        %v495 = vunpack.c.h.b16 %v440
        %v496 = vunpack.c.l.b16 %v441
        %v497 = vunpack.c.h.b16 %v441
        %v498 = vunpack.c.l.b16 %v442
        %v499 = vunpack.c.h.b16 %v442
        %v500 = vunpack.c.l.b16 %v443
        %v501 = vunpack.c.h.b16 %v443
        %v502 = vunpack.c.l.b16 %v444
        %v503 = vunpack.c.h.b16 %v444
        %v504 = vunpack.c.l.b16 %v445
        %v505 = vunpack.c.h.b16 %v445
        %v506 = vunpack.c.l.b16 %v446
        %v507 = vunpack.c.h.b16 %v446
        %v508 = vunpack.c.l.b16 %v447
        %v509 = vunpack.c.h.b16 %v447
        %v510 = vunpack.c.l.b16 %v448
        %v511 = vunpack.c.h.b16 %v448
        %v512 = vunpack.c.l.b16 %v449
        %v513 = vunpack.c.h.b16 %v449
        %v514 = vunpack.c.l.b16 %v450
        %v515 = vunpack.c.h.b16 %v450
        %v516 = vunpack.c.l.b16 %v451
        %v517 = vunpack.c.h.b16 %v451
        %v518 = vunpack.c.l.b16 %v452
        %v519 = vunpack.c.h.b16 %v452
        %v520 = vunpack.c.l.b16 %v453
        %v521 = vunpack.c.h.b16 %v453
        %v522 = vunpack.c.l.b16 %v454
        %v523 = vunpack.c.h.b16 %v454
        %v524 = vunpack.c.l.b16 %v455
        %v525 = vunpack.c.h.b16 %v455
        %v526 = vunpack.c.l.b16 %v456
        %v527 = vunpack.c.h.b16 %v456
        %v528 = vunpack.c.l.b16 %v457
        %v529 = vunpack.c.h.b16 %v457
        %v530 = vunpack.c.l.b16 %v458
        %v531 = vunpack.c.h.b16 %v458
        %v532 = vunpack.c.l.b16 %v459
        %v533 = vunpack.c.h.b16 %v459
        %v534 = vunpack.c.l.b16 %v460
        %v535 = vunpack.c.h.b16 %v460
        %v536 = vunpack.c.l.b16 %v461
        %v537 = vunpack.c.h.b16 %v461
        %v538 = vunpack.c.l.b16 %v462
        %v539 = vunpack.c.h.b16 %v462
        %v540 = vunpack.c.l.b16 %v463
        %v541 = vunpack.c.h.b16 %v463
        %v542 = vpack.c.b16 %v496, %v494
        %v543 = vpack.c.b16 %v497, %v495
        %v544 = vpack.c.b16 %v500, %v498
        %v545 = vpack.c.b16 %v501, %v499
        %v546 = vpack.c.b16 %v504, %v502
        %v547 = vpack.c.b16 %v505, %v503
        %v548 = vpack.c.b16 %v508, %v506
        %v549 = vpack.c.b16 %v509, %v507
        %v550 = vpack.c.b16 %v512, %v510
        %v551 = vpack.c.b16 %v513, %v511
        %v552 = vpack.c.b16 %v516, %v514
        %v553 = vpack.c.b16 %v517, %v515
        %v554 = vpack.c.b16 %v520, %v518
        %v555 = vpack.c.b16 %v521, %v519
        %v556 = vpack.c.b16 %v524, %v522
        %v557 = vpack.c.b16 %v525, %v523
        %v558 = vpack.c.b16 %v528, %v526
        %v559 = vpack.c.b16 %v529, %v527
        %v560 = vpack.c.b16 %v532, %v530
        %v561 = vpack.c.b16 %v533, %v531
        %v562 = vpack.c.b16 %v536, %v534
        %v563 = vpack.c.b16 %v537, %v535
        %v564 = vpack.c.b16 %v540, %v538
        %v565 = vpack.c.b16 %v541, %v539
        %v591 = vsel %vm367, %v439, 0
        %593 = vmatpush.bf16.msra.mxu0 %v556
        %594 = vmatpush.bf16.msra.mxu0 %v554
        %595 = vmatpush.bf16.msra.mxu0 %v552
        %596 = vmatpush.bf16.msra.mxu0 %v550
        %597 = vmatpush.bf16.msra.mxu0 %v548
        %598 = vmatpush.bf16.msra.mxu0 %v546
        %599 = vmatpush.bf16.msra.mxu0 %v544
        %600 = vmatpush.bf16.msra.mxu0 %v542
        %601 = vmatmul.bf16.gmra.mxu0 %v438
        %v602 = vpop.f32.mrf.mxu0
        %v603 = vadd.f32 %v466, %v602
        %v604 = vpop.f32.mrf.mxu0
        %v605 = vadd.f32 %v466, %v604
        %606 = vdwg.mxu0
        %607 = vmatpush.bf16.msra.mxu0 0
        %608 = vmatpush.bf16.msra.mxu0 0
        %609 = vmatpush.bf16.msra.mxu0 0
        %610 = vmatpush.bf16.msra.mxu0 0
        %611 = vmatpush.bf16.msra.mxu0 %v564
        %612 = vmatpush.bf16.msra.mxu0 %v562
        %613 = vmatpush.bf16.msra.mxu0 %v560
        %614 = vmatpush.bf16.msra.mxu0 %v558
        %615 = vmatmul.bf16.gmra.mxu0 %v591
        %v616 = vpop.f32.mrf.mxu0
        %v617 = vadd.f32 %v603, %v616
        %v618 = vpop.f32.mrf.mxu0
        %v619 = vadd.f32 %v605, %v618
        %620 = vdwg.mxu0
        %621 = vmatpush.bf16.msra.mxu0 %v557
        %622 = vmatpush.bf16.msra.mxu0 %v555
        %623 = vmatpush.bf16.msra.mxu0 %v553
        %624 = vmatpush.bf16.msra.mxu0 %v551
        %625 = vmatpush.bf16.msra.mxu0 %v549
        %626 = vmatpush.bf16.msra.mxu0 %v547
        %627 = vmatpush.bf16.msra.mxu0 %v545
        %628 = vmatpush.bf16.msra.mxu0 %v543
        %629 = vmatmul.bf16.gmra.mxu0 %v438
        %v630 = vpop.f32.mrf.mxu0
        %v631 = vadd.f32 %v467, %v630
        %v632 = vpop.f32.mrf.mxu0
        %v633 = vadd.f32 %v467, %v632
        %634 = vdwg.mxu0
        %635 = vmatpush.bf16.msra.mxu0 0
        %636 = vmatpush.bf16.msra.mxu0 0
        %637 = vmatpush.bf16.msra.mxu0 0
        %638 = vmatpush.bf16.msra.mxu0 0
        %639 = vmatpush.bf16.msra.mxu0 %v565
        %640 = vmatpush.bf16.msra.mxu0 %v563
        %641 = vmatpush.bf16.msra.mxu0 %v561
        %642 = vmatpush.bf16.msra.mxu0 %v559
        %643 = vmatmul.bf16.gmra.mxu0 %v591
        %v644 = vpop.f32.mrf.mxu0
        %v645 = vadd.f32 %v631, %v644
        %v646 = vpop.f32.mrf.mxu0
        %v647 = vadd.f32 %v633, %v646
        %648 = vdwg.mxu0
        %v649 = vmul.f32 %v617, 0.2
        %v650 = vmul.f32 %v645, 0.2
        %v651 = vmul.f32 %v619, 0.2
        %v652 = vmul.f32 %v647, 0.2
        %v653 = vadd.f32 %v649, %v371
        %v654 = vadd.f32 %v650, %v365
        %v655 = vadd.f32 %v651, %v372
        %v656 = vadd.f32 %v652, %v366
        %657 = vst [vmem:[%s335] sm:$0xff] %v653
        %658 = vst.msk [vmem:[%s335 + $0x8] sm:$0xff] %vm367, %v654
        %659 = vst [vmem:[%s335 + $0x10] sm:$0xff] %v655
        %660 = vst.msk [vmem:[%s335 + $0x18] sm:$0xff] %vm367, %v656
        %s661 = smul.u32 2, %s22
        %s662 = smul.u32 2, %s21
        %p663 = scmp.lt.s32.totalorder %s661, 3
        %s664 = scalar_select %p663, %s661, 3
        %p665 = scmp.lt.s32.totalorder %s662, 1
        %s666 = scalar_select %p665, %s662, 1
        %s667 = smul.addr %s664, 2
        %s668 = sadd.s32 %s666, %s667
        %s669 = smul.addr %s668, 8
        %s670 = scalar_lea.vmem %s5, %s669
        // Predicated region
        $region45: #{_lambda_.1} parent=39 // pred_check
          %p671 = pneg %p179
        $region46: #{_lambda_.1} parent=39 // pred_check_branch
          %673 = sbr.rel (%p671) target = $region48
        $region47: #{_lambda_.1} parent=39 // pred_region
          %s674 = smul.u32 2, %s22
          %s675 = smul.u32 2, %s21
        $region48: #{_lambda_.1} parent=39 // pred_fallthru
          _
      $region40: #{_lambda_.1} parent=5 // pred_fallthru
        _
      %p676 = scmp.le.s32.totalorder 2, %s12
      // Predicated region
      $region49: #{_lambda_.1} parent=5 // pred_check
        %p677 = pneg %p676
      $region50: #{_lambda_.1} parent=5 // pred_check_branch
        %679 = sbr.rel (%p677) target = $region52
      $region51: #{_lambda_.1} parent=5 // pred_region
        %s680 = ssub.s32 %s12, 2
        // Predicated region
        $region53: #{_lambda_.1} parent=51 // pred_check
          %p681 = pneg %p185
        $region54: #{_lambda_.1} parent=51 // pred_check_branch
          %683 = sbr.rel (%p681) target = $region56
        $region55: #{_lambda_.1} parent=51 // pred_region
          %s684 = smul.u32 2, %s24
          %s685 = smul.u32 2, %s23
          %p686 = scmp.lt.s32.totalorder %s684, 3
          %s687 = scalar_select %p686, %s684, 3
          %p688 = scmp.lt.s32.totalorder %s685, 1
          %s689 = scalar_select %p688, %s685, 1
          %s690 = smul.addr %s687, 2
          %s691 = sadd.s32 %s689, %s690
          %s692 = smul.addr %s691, 8
          %s693 = scalar_lea.vmem %s5, %s692
        $region56: #{_lambda_.1} parent=51 // pred_fallthru
          _
      $region52: #{_lambda_.1} parent=5 // pred_fallthru
        _
    $region6: #{_lambda_.1} parent=1 // loop_footer
      %s16 = sadd.s32 1, %s12
    $region7: #{_lambda_.1} parent=1 // loop_footer_branch
      %11 = sbr.rel target = $region3
    $region8: #{_lambda_.1} parent=1 // loop_exit
      _
    %694 = vsyncpa [#allocation3], 1
    %s695 = scalar_lea.sflag [#allocation3], 1
    %696 = vsyncpa %s695, 1

</llo_original>
